<compile_context>
chip_gen: v7x
topology: tpu7x:2x2x1
jax: 0.10.0
libtpu: 0.0.40
codegen_flags: <defaults>
</compile_context>

<pallas_src>
import functools

import jax
import jax.numpy as jnp
from jax.experimental import pallas as pl
from jax.experimental.pallas import tpu as pltpu


def _round_up(x, m):
    return (x + m - 1) // m * m


def single_rnn_kernel(x01_ref, wx_ref, wy_ref, b_ref, out_ref, *, bp):
    # x01_ref : [2*Bp, Kp]  X0 rows (padded to Bp) stacked over X1 rows
    # wx_ref  : [Kp, Np]    both dims padded to 128
    # wy_ref  : [Np, Np]
    # b_ref   : [1, Np]
    # out_ref : [2*Bp, Np]  Y0 rows stacked over Y1 rows
    x01 = x01_ref[...]
    wx = wx_ref[...]
    wy = wy_ref[...]
    b = b_ref[...]

    # One MXU pass of Wx covers both timesteps; bias added once.
    zb = jnp.dot(x01, wx, preferred_element_type=jnp.float32) + b

    y0 = jnp.tanh(zb[:bp, :])
    y1 = jnp.tanh(
        jnp.dot(y0, wy, preferred_element_type=jnp.float32) + zb[bp:, :]
    )

    # Both stores are sublane-aligned (Bp % 8 == 0) and lane-dense (Np % 128 == 0).
    out_ref[:bp, :] = y0.astype(out_ref.dtype)
    out_ref[bp:, :] = y1.astype(out_ref.dtype)


def single_rnn_forward(x0, x1, wx, wy, b):
    batch, n_inputs = x0.shape
    n_neurons = wx.shape[1]

    bp = _round_up(batch, 8)           # sublane-align each timestep's row block
    kp = _round_up(n_inputs, 128)      # lane-dense contraction width
    npad = _round_up(n_neurons, 128)   # lane-dense neuron width

    # Stack the two timesteps into a single operand (one Wx matmul), padding
    # batch rows to Bp and the contraction dim to Kp with zeros.
    x01 = jnp.zeros((2 * bp, kp), jnp.float32)
    x01 = x01.at[:batch, :n_inputs].set(x0.astype(jnp.float32))
    x01 = x01.at[bp:bp + batch, :n_inputs].set(x1.astype(jnp.float32))

    # Zero-pad weights / bias once in the wrapper (layout plumbing, not compute).
    wx_p = (jnp.zeros((kp, npad), jnp.float32)
            .at[:n_inputs, :n_neurons].set(wx.astype(jnp.float32)))
    wy_p = (jnp.zeros((npad, npad), jnp.float32)
            .at[:n_neurons, :n_neurons].set(wy.astype(jnp.float32)))
    b_p = jnp.zeros((1, npad), jnp.float32).at[:, :n_neurons].set(
        b.astype(jnp.float32))

    flops = 2 * (2 * bp * kp * npad + bp * npad * npad)
    transcendentals = 2 * bp * npad
    bytes_accessed = 4 * (x01.size + wx_p.size + wy_p.size + b_p.size
                          + 2 * bp * npad)

    vmem_spec = pl.BlockSpec(memory_space=pltpu.MemorySpace.VMEM)
    out = pl.pallas_call(
        functools.partial(single_rnn_kernel, bp=bp),
        out_shape=jax.ShapeDtypeStruct((2 * bp, npad), jnp.float32),
        in_specs=[vmem_spec] * 4,
        out_specs=vmem_spec,
        cost_estimate=pl.CostEstimate(
            flops=flops,
            transcendentals=transcendentals,
            bytes_accessed=bytes_accessed,
        ),
    )(x01, wx_p, wy_p, b_p)

    y0 = out[:batch, :n_neurons]
    y1 = out[bp:bp + batch, :n_neurons]
    return y0, y1


if __name__ == "__main__":
    # Small shapes consistent with the module's forward: two time-step inputs.
    batch = 4
    n_inputs = 16
    n_neurons = 32

    key = jax.random.PRNGKey(0)
    k_x0, k_x1, k_wx, k_wy = jax.random.split(key, 4)

    # Deterministic parameter init (mirrors torch.randn / torch.zeros shapes).
    wx = jax.random.normal(k_wx, (n_inputs, n_neurons), dtype=jnp.float32)
    wy = jax.random.normal(k_wy, (n_neurons, n_neurons), dtype=jnp.float32)
    b = jnp.zeros((1, n_neurons), dtype=jnp.float32)

    x0 = jax.random.normal(k_x0, (batch, n_inputs), dtype=jnp.float32)
    x1 = jax.random.normal(k_x1, (batch, n_inputs), dtype=jnp.float32)

    y0, y1 = single_rnn_forward(x0, x1, wx, wy, b)
    jax.block_until_ready((y0, y1))

    # Reference check in plain JAX.
    y0_ref = jnp.tanh(x0 @ wx + b)
    y1_ref = jnp.tanh(y0_ref @ wy + x1 @ wx + b)
    assert jnp.allclose(y0, y0_ref, atol=1e-5, rtol=1e-5)
    assert jnp.allclose(y1, y1_ref, atol=1e-5, rtol=1e-5)

    print("KERNEL_OK")
</pallas_src>

<mosaic_0001>
module attributes {stable_mosaic.version = 11 : i64} {
  func.func @single_rnn_kernel(%arg0: memref<16x128xf32, #tpu.memory_space<vmem>>, %arg1: memref<128x128xf32, #tpu.memory_space<vmem>>, %arg2: memref<128x128xf32, #tpu.memory_space<vmem>>, %arg3: memref<1x128xf32, #tpu.memory_space<vmem>>, %arg4: memref<16x128xf32, #tpu.memory_space<vmem>>) attributes {dimension_semantics = [], scalar_prefetch = 0 : i64, scratch_operands = 0 : i64, tpu.core_type = #tpu.core_type<tc>} {
    %c0 = arith.constant 0 : index
    %c0_0 = arith.constant 0 : index
    %0 = vector.load %arg0[%c0, %c0_0] : memref<16x128xf32, #tpu.memory_space<vmem>>, vector<16x128xf32>
    %c0_1 = arith.constant 0 : index
    %c0_2 = arith.constant 0 : index
    %1 = vector.load %arg1[%c0_1, %c0_2] : memref<128x128xf32, #tpu.memory_space<vmem>>, vector<128x128xf32>
    %c0_3 = arith.constant 0 : index
    %c0_4 = arith.constant 0 : index
    %2 = vector.load %arg2[%c0_3, %c0_4] : memref<128x128xf32, #tpu.memory_space<vmem>>, vector<128x128xf32>
    %c0_5 = arith.constant 0 : index
    %c0_6 = arith.constant 0 : index
    %3 = vector.load %arg3[%c0_5, %c0_6] : memref<1x128xf32, #tpu.memory_space<vmem>>, vector<1x128xf32>
    %cst = arith.constant dense<0.000000e+00> : vector<16x128xf32>
    %4 = tpu.matmul %0, %1, %cst {dimension_numbers = #tpu.dot_dimension_numbers<[1], [0], [0], [1], [0, 0, 1, 1], [], []>} : vector<16x128xf32>, vector<128x128xf32>, vector<16x128xf32> -> vector<16x128xf32>
    %5 = vector.broadcast %3 : vector<1x128xf32> to vector<16x128xf32>
    %6 = arith.addf %4, %5 : vector<16x128xf32>
    %7 = vector.extract_strided_slice %6 {offsets = [0, 0], sizes = [8, 128], strides = [1, 1]} : vector<16x128xf32> to vector<8x128xf32>
    %8 = math.tanh %7 : vector<8x128xf32>
    %cst_7 = arith.constant dense<0.000000e+00> : vector<8x128xf32>
    %9 = tpu.matmul %8, %2, %cst_7 {dimension_numbers = #tpu.dot_dimension_numbers<[1], [0], [0], [1], [0, 0, 1, 1], [], []>} : vector<8x128xf32>, vector<128x128xf32>, vector<8x128xf32> -> vector<8x128xf32>
    %10 = vector.extract_strided_slice %6 {offsets = [8, 0], sizes = [8, 128], strides = [1, 1]} : vector<16x128xf32> to vector<8x128xf32>
    %11 = arith.addf %9, %10 : vector<8x128xf32>
    %12 = math.tanh %11 : vector<8x128xf32>
    %c0_8 = arith.constant 0 : index
    %c0_9 = arith.constant 0 : index
    %13 = vector.load %arg4[%c0_8, %c0_9] : memref<16x128xf32, #tpu.memory_space<vmem>>, vector<8x128xf32>
    tpu.vector_store %arg4[%c0_8, %c0_9], %8 {strides = array<i32>} : memref<16x128xf32, #tpu.memory_space<vmem>>, vector<8x128xf32>,
    %c8 = arith.constant 8 : index
    %c0_10 = arith.constant 0 : index
    %14 = vector.load %arg4[%c8, %c0_10] : memref<16x128xf32, #tpu.memory_space<vmem>>, vector<8x128xf32>
    tpu.vector_store %arg4[%c8, %c0_10], %12 {strides = array<i32>} : memref<16x128xf32, #tpu.memory_space<vmem>>, vector<8x128xf32>,
    return
  }
}

</mosaic_0001>

<llo_original>
// kernel: tpu_custom_call.1
$region0: #{tpu_custom_call.1}
  #allocation0 [shape = 'u32[]', space=smem, size = 0x4, offset = 0x4, fixed_abs, tag = 'smem constant byte address 0x4 - core index']
  #allocation1 [shape = 'u32[144,128]{1,0:T(1,128)}', space=vmem, size = 0x12000, scoped, tag = 'internal scratch']
  %s0 = inlined_call_operand.hbm [shape: f32[16,128], index: 0, kind: input, shape index: {}]
  %s1 = inlined_call_operand.hbm [shape: f32[128,128], index: 1, kind: input, shape index: {}]
  %s2 = inlined_call_operand.hbm [shape: f32[128,128], index: 2, kind: input, shape index: {}]
  %s3 = inlined_call_operand.vmem [shape: f32[1,128], index: 3, kind: input, shape index: {}]
  %s4 = inlined_call_operand.hbm [shape: f32[16,128], index: 4, kind: output, shape index: {}]
  %s5 = sld [smem:[#allocation0]]
  $region38: #{tpu_custom_call.1} parent=0
    _
  %s7 = ssub.s32 1, %s5
  %s8 = scalar_select 0, %s7, %s5
  $region1: #{tpu_custom_call.1} parent=0
    #allocation2 [shape = 'u8[8192]{0}', space=vmem, size = 0x2000, scoped, tag = 'input window, operand 0, single buffered']
    #allocation3 [shape = 's32[1]{0}', space=sflag, size = 0x4, scoped, tag = 'scoped memory for tpu_custom_call.1']
    #allocation4 [shape = 's32[1]{0}', space=sflag, size = 0x4, scoped, tag = 'scoped memory for tpu_custom_call.1']
    #allocation5 [shape = 'u8[65536]{0}', space=vmem, size = 0x10000, scoped, tag = 'input window, operand 1, single buffered']
    #allocation6 [shape = 's32[1]{0}', space=sflag, size = 0x4, scoped, tag = 'scoped memory for tpu_custom_call.1']
    #allocation7 [shape = 'u8[65536]{0}', space=vmem, size = 0x10000, scoped, tag = 'input window, operand 2, single buffered']
    #allocation8 [shape = 'u8[8192]{0}', space=vmem, size = 0x2000, scoped, tag = 'output window, operand 0, single buffered']
    %9 = vsyncpa [#allocation3], 0
    %10 = vsyncpa [#allocation6], 0
    %11 = vsyncpa [#allocation4], 0
    // Predicated region
    $region2: #{tpu_custom_call.1} parent=1 // pred_check
      _
    $region3: #{tpu_custom_call.1} parent=1 // pred_check_branch
      %13 = sbr.rel (0) target = $region5
    $region4: #{tpu_custom_call.1} parent=1 // pred_region
      %s15 = ssub.s32 256, 256
      %16 = vsyncadd [#allocation3], %s15
      %s17 = sshll.u32 [#allocation2], 4
      %s18 = int_to_ptr.vmem [resolvable:$true] %s17
      %23 = dma.hbm_to_vmem [thread:$0]  %s0, 256, %s18, [#allocation3], 128, 128, 8
    $region5: #{tpu_custom_call.1} parent=1 // pred_fallthru
      _
    // Predicated region
    $region6: #{tpu_custom_call.1} parent=1 // pred_check
      _
    $region7: #{tpu_custom_call.1} parent=1 // pred_check_branch
      %25 = sbr.rel (0) target = $region9
    $region8: #{tpu_custom_call.1} parent=1 // pred_region
      %s27 = ssub.s32 2048, 2048
      %28 = vsyncadd [#allocation6], %s27
      %s29 = sshll.u32 [#allocation5], 4
      %s30 = int_to_ptr.vmem [resolvable:$true] %s29
      %35 = dma.hbm_to_vmem [thread:$0]  %s1, 2048, %s30, [#allocation6], 128, 128, 8
    $region9: #{tpu_custom_call.1} parent=1 // pred_fallthru
      _
    // Predicated region
    $region10: #{tpu_custom_call.1} parent=1 // pred_check
      _
    $region11: #{tpu_custom_call.1} parent=1 // pred_check_branch
      %37 = sbr.rel (0) target = $region13
    $region12: #{tpu_custom_call.1} parent=1 // pred_region
      %s39 = ssub.s32 2048, 2048
      %40 = vsyncadd [#allocation6], %s39
      %s41 = sshll.u32 [#allocation7], 4
      %s42 = int_to_ptr.vmem [resolvable:$true] %s41
      %47 = dma.hbm_to_vmem [thread:$0]  %s2, 2048, %s42, [#allocation6], 128, 128, 8
    $region13: #{tpu_custom_call.1} parent=1 // pred_fallthru
      _
    // Predicated region
    $region14: #{tpu_custom_call.1} parent=1 // pred_check
      _
    $region15: #{tpu_custom_call.1} parent=1 // pred_check_branch
      %49 = sbr.rel (0) target = $region17
    $region16: #{tpu_custom_call.1} parent=1 // pred_region
      _
    $region17: #{tpu_custom_call.1} parent=1 // pred_fallthru
      _
    // Predicated region
    $region18: #{tpu_custom_call.1} parent=1 // pred_check
      _
    $region19: #{tpu_custom_call.1} parent=1 // pred_check_branch
      %51 = sbr.rel (0) target = $region21
    $region20: #{tpu_custom_call.1} parent=1 // pred_region
      %52 = dma.done [#allocation3], 256
    $region21: #{tpu_custom_call.1} parent=1 // pred_fallthru
      _
    // Predicated region
    $region22: #{tpu_custom_call.1} parent=1 // pred_check
      _
    $region23: #{tpu_custom_call.1} parent=1 // pred_check_branch
      %54 = sbr.rel (0) target = $region25
    $region24: #{tpu_custom_call.1} parent=1 // pred_region
      %55 = dma.done [#allocation6], 2048
    $region25: #{tpu_custom_call.1} parent=1 // pred_fallthru
      _
    // Predicated region
    $region26: #{tpu_custom_call.1} parent=1 // pred_check
      _
    $region27: #{tpu_custom_call.1} parent=1 // pred_check_branch
      %57 = sbr.rel (0) target = $region29
    $region28: #{tpu_custom_call.1} parent=1 // pred_region
      %58 = dma.done [#allocation6], 2048
    $region29: #{tpu_custom_call.1} parent=1 // pred_fallthru
      _
    %v59 = vld [vmem:[#allocation2] sm:$0xff]
    %v60 = vld [vmem:[#allocation2 + $0x8] sm:$0xff]
    %v61 = vld [vmem:[#allocation5] sm:$0xff]
    %v62 = vld [vmem:[#allocation5 + $0x8] sm:$0xff]
    %v63 = vld [vmem:[#allocation5 + $0x10] sm:$0xff]
    %v64 = vld [vmem:[#allocation5 + $0x18] sm:$0xff]
    %v65 = vld [vmem:[#allocation5 + $0x20] sm:$0xff]
    %v66 = vld [vmem:[#allocation5 + $0x28] sm:$0xff]
    %v67 = vld [vmem:[#allocation5 + $0x30] sm:$0xff]
    %v68 = vld [vmem:[#allocation5 + $0x38] sm:$0xff]
    %v69 = vld [vmem:[#allocation5 + $0x40] sm:$0xff]
    %v70 = vld [vmem:[#allocation5 + $0x48] sm:$0xff]
    %v71 = vld [vmem:[#allocation5 + $0x50] sm:$0xff]
    %v72 = vld [vmem:[#allocation5 + $0x58] sm:$0xff]
    %v73 = vld [vmem:[#allocation5 + $0x60] sm:$0xff]
    %v74 = vld [vmem:[#allocation5 + $0x68] sm:$0xff]
    %v75 = vld [vmem:[#allocation5 + $0x70] sm:$0xff]
    %v76 = vld [vmem:[#allocation5 + $0x78] sm:$0xff]
    %v77 = vld [vmem:[#allocation7] sm:$0xff]
    %v78 = vld [vmem:[#allocation7 + $0x8] sm:$0xff]
    %v79 = vld [vmem:[#allocation7 + $0x10] sm:$0xff]
    %v80 = vld [vmem:[#allocation7 + $0x18] sm:$0xff]
    %v81 = vld [vmem:[#allocation7 + $0x20] sm:$0xff]
    %v82 = vld [vmem:[#allocation7 + $0x28] sm:$0xff]
    %v83 = vld [vmem:[#allocation7 + $0x30] sm:$0xff]
    %v84 = vld [vmem:[#allocation7 + $0x38] sm:$0xff]
    %v85 = vld [vmem:[#allocation7 + $0x40] sm:$0xff]
    %v86 = vld [vmem:[#allocation7 + $0x48] sm:$0xff]
    %v87 = vld [vmem:[#allocation7 + $0x50] sm:$0xff]
    %v88 = vld [vmem:[#allocation7 + $0x58] sm:$0xff]
    %v89 = vld [vmem:[#allocation7 + $0x60] sm:$0xff]
    %v90 = vld [vmem:[#allocation7 + $0x68] sm:$0xff]
    %v91 = vld [vmem:[#allocation7 + $0x70] sm:$0xff]
    %v92 = vld [vmem:[#allocation7 + $0x78] sm:$0xff]
    %v93 = vld [vmem:[%s3] sm:$0x1]
    %v95 = vlaneseq
    %v96 = vshrl.u32 %v95, 7
    %v97 = vsub.s32 0, %v96
    %v98 = vrot.slane %v93, %v97
    %100 = vmatprep.subr.mxu0 0.0
    %101 = vmatpush1.msra.mxu0 %v61
    %102 = vmatprep.subr.mxu0 0.0
    %103 = vmatpush1.msra.mxu0 %v62
    %104 = vmatprep.subr.mxu0 0.0
    %105 = vmatpush1.msra.mxu0 %v63
    %106 = vmatprep.subr.mxu0 0.0
    %107 = vmatpush1.msra.mxu0 %v64
    %108 = vmatprep.subr.mxu0 0.0
    %109 = vmatpush1.msra.mxu0 %v65
    %110 = vmatprep.subr.mxu0 0.0
    %111 = vmatpush1.msra.mxu0 %v66
    %112 = vmatprep.subr.mxu0 0.0
    %113 = vmatpush1.msra.mxu0 %v67
    %114 = vmatprep.subr.mxu0 0.0
    %115 = vmatpush1.msra.mxu0 %v68
    %116 = vmatprep.subr.mxu0 0.0
    %117 = vmatpush1.msra.mxu0 %v69
    %118 = vmatprep.subr.mxu0 0.0
    %119 = vmatpush1.msra.mxu0 %v70
    %120 = vmatprep.subr.mxu0 0.0
    %121 = vmatpush1.msra.mxu0 %v71
    %122 = vmatprep.subr.mxu0 0.0
    %123 = vmatpush1.msra.mxu0 %v72
    %124 = vmatprep.subr.mxu0 0.0
    %125 = vmatpush1.msra.mxu0 %v73
    %126 = vmatprep.subr.mxu0 0.0
    %127 = vmatpush1.msra.mxu0 %v74
    %128 = vmatprep.subr.mxu0 0.0
    %129 = vmatpush1.msra.mxu0 %v75
    %130 = vmatprep.subr.mxu0 0.0
    %131 = vmatpush1.msra.mxu0 %v76
    %132 = vmatprep.subr.mxu0 0.0
    %133 = vmatpush1.msra.mxu0 0.0
    %134 = vmatprep.subr.mxu0 0.0
    %135 = vmatpush1.msra.mxu0 0.0
    %136 = vmatprep.subr.mxu0 0.0
    %137 = vmatpush1.msra.mxu0 0.0
    %138 = vmatprep.subr.mxu0 0.0
    %139 = vmatpush1.msra.mxu0 0.0
    %140 = vmatprep.subr.mxu0 0.0
    %141 = vmatpush1.msra.mxu0 0.0
    %142 = vmatprep.subr.mxu0 0.0
    %143 = vmatpush1.msra.mxu0 0.0
    %144 = vmatprep.subr.mxu0 0.0
    %145 = vmatpush1.msra.mxu0 0.0
    %146 = vmatprep.subr.mxu0 0.0
    %147 = vmatpush1.msra.mxu0 0.0
    %148 = vmatprep.subr.mxu0 0.0
    %149 = vmatpush1.msra.mxu0 0.0
    %150 = vmatprep.subr.mxu0 0.0
    %151 = vmatpush1.msra.mxu0 0.0
    %152 = vmatprep.subr.mxu0 0.0
    %153 = vmatpush1.msra.mxu0 0.0
    %154 = vmatprep.subr.mxu0 0.0
    %155 = vmatpush1.msra.mxu0 0.0
    %156 = vmatprep.subr.mxu0 0.0
    %157 = vmatpush1.msra.mxu0 0.0
    %158 = vmatprep.subr.mxu0 0.0
    %159 = vmatpush1.msra.mxu0 0.0
    %160 = vmatprep.subr.mxu0 0.0
    %161 = vmatpush1.msra.mxu0 0.0
    %162 = vmatprep.subr.mxu0 0.0
    %163 = vmatpush1.msra.mxu0 0.0
    %164 = vmatprep.mubr.f32.mxu0 0.0
    %165 = vmatmul.mubr.f32.gmra.mrb[0].mxu0 %v59
    %v166 = vpop.f32.mrb[0].mxu0
    %v167 = vadd.f32 %v98, %v166
    %v168 = vpop.f32.mrb[0].mxu0
    %169 = vmatprep.mubr.f32.mxu0 0.0
    %170 = vmatmul.mubr.f32.gmra.mrb[0].mxu0 %v60
    %v171 = vpop.f32.mrb[0].mxu0
    %v172 = vadd.f32 %v98, %v171
    %v173 = vpop.f32.mrb[0].mxu0
    %174 = vdwg.mxu0
    %v175 = vtanh.pop %v167
    %176 = vmatprep.subr.mxu0 0.0
    %177 = vmatpush1.msra.mxu0 %v77
    %178 = vmatprep.subr.mxu0 0.0
    %179 = vmatpush1.msra.mxu0 %v78
    %180 = vmatprep.subr.mxu0 0.0
    %181 = vmatpush1.msra.mxu0 %v79
    %182 = vmatprep.subr.mxu0 0.0
    %183 = vmatpush1.msra.mxu0 %v80
    %184 = vmatprep.subr.mxu0 0.0
    %185 = vmatpush1.msra.mxu0 %v81
    %186 = vmatprep.subr.mxu0 0.0
    %187 = vmatpush1.msra.mxu0 %v82
    %188 = vmatprep.subr.mxu0 0.0
    %189 = vmatpush1.msra.mxu0 %v83
    %190 = vmatprep.subr.mxu0 0.0
    %191 = vmatpush1.msra.mxu0 %v84
    %192 = vmatprep.subr.mxu0 0.0
    %193 = vmatpush1.msra.mxu0 %v85
    %194 = vmatprep.subr.mxu0 0.0
    %195 = vmatpush1.msra.mxu0 %v86
    %196 = vmatprep.subr.mxu0 0.0
    %197 = vmatpush1.msra.mxu0 %v87
    %198 = vmatprep.subr.mxu0 0.0
    %199 = vmatpush1.msra.mxu0 %v88
    %200 = vmatprep.subr.mxu0 0.0
    %201 = vmatpush1.msra.mxu0 %v89
    %202 = vmatprep.subr.mxu0 0.0
    %203 = vmatpush1.msra.mxu0 %v90
    %204 = vmatprep.subr.mxu0 0.0
    %205 = vmatpush1.msra.mxu0 %v91
    %206 = vmatprep.subr.mxu0 0.0
    %207 = vmatpush1.msra.mxu0 %v92
    %208 = vmatprep.subr.mxu0 0.0
    %209 = vmatpush1.msra.mxu0 0.0
    %210 = vmatprep.subr.mxu0 0.0
    %211 = vmatpush1.msra.mxu0 0.0
    %212 = vmatprep.subr.mxu0 0.0
    %213 = vmatpush1.msra.mxu0 0.0
    %214 = vmatprep.subr.mxu0 0.0
    %215 = vmatpush1.msra.mxu0 0.0
    %216 = vmatprep.subr.mxu0 0.0
    %217 = vmatpush1.msra.mxu0 0.0
    %218 = vmatprep.subr.mxu0 0.0
    %219 = vmatpush1.msra.mxu0 0.0
    %220 = vmatprep.subr.mxu0 0.0
    %221 = vmatpush1.msra.mxu0 0.0
    %222 = vmatprep.subr.mxu0 0.0
    %223 = vmatpush1.msra.mxu0 0.0
    %224 = vmatprep.subr.mxu0 0.0
    %225 = vmatpush1.msra.mxu0 0.0
    %226 = vmatprep.subr.mxu0 0.0
    %227 = vmatpush1.msra.mxu0 0.0
    %228 = vmatprep.subr.mxu0 0.0
    %229 = vmatpush1.msra.mxu0 0.0
    %230 = vmatprep.subr.mxu0 0.0
    %231 = vmatpush1.msra.mxu0 0.0
    %232 = vmatprep.subr.mxu0 0.0
    %233 = vmatpush1.msra.mxu0 0.0
    %234 = vmatprep.subr.mxu0 0.0
    %235 = vmatpush1.msra.mxu0 0.0
    %236 = vmatprep.subr.mxu0 0.0
    %237 = vmatpush1.msra.mxu0 0.0
    %238 = vmatprep.subr.mxu0 0.0
    %239 = vmatpush1.msra.mxu0 0.0
    %240 = vmatprep.mubr.f32.mxu0 0.0
    %241 = vmatmul.mubr.f32.gmra.mrb[0].mxu0 %v175
    %v242 = vpop.f32.mrb[0].mxu0
    %v243 = vadd.f32 %v172, %v242
    %v244 = vpop.f32.mrb[0].mxu0
    %245 = vdwg.mxu0
    %v246 = vtanh.pop %v243
    %247 = vst [vmem:[#allocation8] sm:$0xff] %v175
    %248 = vst [vmem:[#allocation8 + $0x8] sm:$0xff] %v246
    // Predicated region
    $region30: #{tpu_custom_call.1} parent=1 // pred_check
      _
    $region31: #{tpu_custom_call.1} parent=1 // pred_check_branch
      %250 = sbr.rel (0) target = $region33
    $region32: #{tpu_custom_call.1} parent=1 // pred_region
      %s252 = ssub.s32 256, 256
      %253 = vsyncadd [#allocation4], %s252
      %s254 = sshll.u32 [#allocation8], 4
      %s255 = int_to_ptr.vmem [resolvable:$true] %s254
      %260 = dma.vmem_to_hbm [thread:$0]  %s255, 256, %s4, [#allocation4], 128, 128, 8
    $region33: #{tpu_custom_call.1} parent=1 // pred_fallthru
      _
    // Predicated region
    $region34: #{tpu_custom_call.1} parent=1 // pred_check
      _
    $region35: #{tpu_custom_call.1} parent=1 // pred_check_branch
      %262 = sbr.rel (0) target = $region37
    $region36: #{tpu_custom_call.1} parent=1 // pred_region
      %263 = dma.done [#allocation4], 256
    $region37: #{tpu_custom_call.1} parent=1 // pred_fallthru
      _
    %264 = vsyncpa [#allocation3], 1
    %265 = vsyncpa [#allocation6], 1
    %266 = vsyncpa [#allocation4], 1

</llo_original>
